<compile_context>
chip_gen: v5e
topology: v5e:2x2
jax: 0.10.0
libtpu: 0.0.40
codegen_flags: <defaults>
</compile_context>

<pallas_src>
import jax
import jax.numpy as jnp
from jax.experimental import pallas as pl
from jax.experimental.pallas import tpu as pltpu


def fusion_kernel(img_ref, evt_ref, w_img_ref, w_evt_ref, b_ref, o_ref):
    # img_ref/evt_ref: (Bt, C, ts)   channels on sublanes, spatial on lanes
    # w_*_ref:         (C_out, C)    resident across the grid
    # b_ref:           (C_out, 1)
    # o_ref:           (Bt, C_out, ts)
    bt = img_ref.shape[0]
    x_img = img_ref[...]
    x_evt = evt_ref[...]
    w_img = jnp.broadcast_to(w_img_ref[...][None], (bt,) + w_img_ref.shape)
    w_evt = jnp.broadcast_to(w_evt_ref[...][None], (bt,) + w_evt_ref.shape)

    # Batched (C_out, C) @ (C, ts) per folded batch -> (Bt, C_out, ts), no transposes.
    acc = jnp.einsum("boc,bcs->bos", w_img, x_img,
                     preferred_element_type=jnp.float32,
                     precision=jax.lax.Precision.HIGHEST)
    acc = acc + jnp.einsum("boc,bcs->bos", w_evt, x_evt,
                           preferred_element_type=jnp.float32,
                           precision=jax.lax.Precision.HIGHEST)
    acc = acc + b_ref[...][None]                 # (1, C_out, 1) broadcast over Bt, lanes
    out = jnp.maximum(acc, 0.1 * acc)            # LeakyReLU(0.1), slope < 1
    o_ref[...] = out.astype(o_ref.dtype)


def _round_up(x, m):
    return ((x + m - 1) // m) * m


def fusion_module(img_feat, event_feat, weight, bias):
    """img_feat, event_feat: (B, C, H, W); weight: (C_out, 2C, 1, 1); bias: (C_out,)."""
    B, C, H, W = img_feat.shape
    C_out = weight.shape[0]
    S = H * W
    itemsize = jnp.dtype(img_feat.dtype).itemsize

    # NCHW -> (B, C, S): collapsing trailing dims is a free reshape.
    img3d = img_feat.reshape(B, C, S)
    evt3d = event_feat.reshape(B, C, S)

    # Split the 1x1-conv weight into the two concat halves, kept as (C_out, C).
    w = weight[:, :, 0, 0]           # (C_out, 2C)
    w_img = w[:, :C]                 # (C_out, C)
    w_evt = w[:, C:]                 # (C_out, C)
    b_col = bias.reshape(C_out, 1)

    # ---- Tile selection (sublane/lane padding aware) -------------------------
    sublane = {4: 8, 2: 16, 1: 32}.get(itemsize, 8)
    Cp = _round_up(C, sublane)           # padded input channels in VMEM
    Cop = _round_up(C_out, sublane)      # padded output channels in VMEM

    # Budget for the double-buffered (img + evt + out) blocks. 32 MiB fits the
    # scoped-VMEM story on every generation once we set vmem_limit_bytes below
    # (v7x physical VMEM is 64 MiB -> stay at or under half of it).
    try:
        vmem_physical = int(pltpu.get_tpu_info().vmem_capacity_bytes)
    except Exception:
        vmem_physical = 64 * 1024 * 1024
    data_budget = min(32 * 1024 * 1024, vmem_physical // 2)

    bytes_per_lane_per_batch = 2 * (2 * Cp + Cop) * itemsize   # 2 = double buffering
    max_lanes_total = max(128, data_budget // bytes_per_lane_per_batch)

    if S <= max_lanes_total:
        # Whole spatial slab per batch in one block; fold as many batches as fit.
        ts = S
        Sp = _round_up(S, 128)
        Bt = max(1, min(B, data_budget // (bytes_per_lane_per_batch * Sp)))
    else:
        Bt = 1
        if max_lanes_total >= 512:
            ts = (max_lanes_total // 512) * 512
        else:
            ts = (max_lanes_total // 128) * 128
        ts = max(128, min(ts, S))

    # Megacore (v7x has 2 TCs): make sure there are at least 2 grid steps when
    # the problem allows it.
    total_steps = pl.cdiv(B, Bt) * pl.cdiv(S, ts)
    if total_steps < 2:
        if B >= 2:
            Bt = pl.cdiv(B, 2)
        elif S >= 256:
            ts = min(S, _round_up(pl.cdiv(S, 2), 128))

    grid = (pl.cdiv(B, Bt), pl.cdiv(S, ts))

    # Explicit VMEM limit derived from the actual padded footprint (+ headroom).
    ts_pad = _round_up(ts, 128)
    data_bytes = 2 * Bt * ts_pad * (2 * Cp + Cop) * itemsize       # double-buffered I/O
    weight_bytes = (2 * Cop * _round_up(C, 128) + Cop * 128) * itemsize
    vmem_limit = int(min(max(data_bytes + 2 * weight_bytes + (4 << 20), 16 << 20),
                         48 << 20))

    flops = 2 * B * S * C_out * (2 * C) + 2 * B * S * C_out
    bytes_accessed = ((2 * C + C_out) * B * S + 2 * C_out * C + C_out) * itemsize

    out3d = pl.pallas_call(
        fusion_kernel,
        out_shape=jax.ShapeDtypeStruct((B, C_out, S), img_feat.dtype),
        grid_spec=pl.GridSpec(
            grid=grid,
            in_specs=[
                pl.BlockSpec((Bt, C, ts), lambda b, s: (b, 0, s)),   # img tile
                pl.BlockSpec((Bt, C, ts), lambda b, s: (b, 0, s)),   # event tile
                pl.BlockSpec((C_out, C), lambda b, s: (0, 0)),       # w_img (resident)
                pl.BlockSpec((C_out, C), lambda b, s: (0, 0)),       # w_evt (resident)
                pl.BlockSpec((C_out, 1), lambda b, s: (0, 0)),       # bias  (resident)
            ],
            out_specs=pl.BlockSpec((Bt, C_out, ts), lambda b, s: (b, 0, s)),
        ),
        compiler_params=pltpu.CompilerParams(
            dimension_semantics=("parallel", "parallel"),
            vmem_limit_bytes=vmem_limit),
        cost_estimate=pl.CostEstimate(
            flops=flops, transcendentals=0, bytes_accessed=bytes_accessed),
    )(img3d, evt3d, w_img, w_evt, b_col)

    # (B, C_out, S) -> NCHW (free reshape).
    return out3d.reshape(B, C_out, H, W)


def _reference(img_feat, event_feat, weight, bias):
    # Pure-JAX reference: concat -> 1x1 conv -> LeakyReLU(0.1), NCHW.
    combined = jnp.concatenate([img_feat, event_feat], axis=1)        # (B, 2C, H, W)
    w = weight[:, :, 0, 0]                                            # (C_out, 2C)
    out = jnp.einsum("bchw,oc->bohw", combined, w,
                     precision=jax.lax.Precision.HIGHEST) + bias[None, :, None, None]
    return jnp.where(out >= 0, out, 0.1 * out)


if __name__ == "__main__":
    B, C, H, W = 2, 4, 16, 16
    key = jax.random.PRNGKey(0)
    k1, k2, k3, k4 = jax.random.split(key, 4)

    img_feat = jax.random.normal(k1, (B, C, H, W), dtype=jnp.float32)
    event_feat = jax.random.normal(k2, (B, C, H, W), dtype=jnp.float32)

    # Deterministic Conv2d(2C -> C, kernel 1x1) params, PyTorch-like uniform init.
    fan_in = 2 * C  # 2C * 1 * 1
    bound = 1.0 / (fan_in ** 0.5)
    weight = jax.random.uniform(k3, (C, 2 * C, 1, 1), jnp.float32, -bound, bound)
    bias = jax.random.uniform(k4, (C,), jnp.float32, -bound, bound)

    out = fusion_module(img_feat, event_feat, weight, bias)
    out = jax.block_until_ready(out)

    ref = _reference(img_feat, event_feat, weight, bias)
    assert out.shape == (B, C, H, W)
    assert jnp.allclose(out, ref, atol=1e-5, rtol=1e-5), "mismatch vs reference"

    print("KERNEL_OK")
</pallas_src>

<mosaic_0001>
module attributes {stable_mosaic.version = 11 : i64} {
  func.func @fusion_kernel(%arg0: i32, %arg1: i32, %arg2: memref<1x4x256xf32, #tpu.memory_space<vmem>>, %arg3: memref<1x4x256xf32, #tpu.memory_space<vmem>>, %arg4: memref<4x4xf32, #tpu.memory_space<vmem>>, %arg5: memref<4x4xf32, #tpu.memory_space<vmem>>, %arg6: memref<4x1xf32, #tpu.memory_space<vmem>>, %arg7: memref<1x4x256xf32, #tpu.memory_space<vmem>>) attributes {dimension_semantics = [#tpu.dimension_semantics<parallel>, #tpu.dimension_semantics<parallel>], iteration_bounds = array<i64: 2, 1>, scalar_prefetch = 0 : i64, scratch_operands = 0 : i64, tpu.core_type = #tpu.core_type<tc>, window_params = [{transform_indices = @transform_0, window_bounds = array<i64: 1, 4, 256>}, {transform_indices = @transform_1, window_bounds = array<i64: 1, 4, 256>}, {pipeline_mode = #tpu.pipeline_mode<synchronous>, transform_indices = @transform_2, window_bounds = array<i64: 4, 4>}, {pipeline_mode = #tpu.pipeline_mode<synchronous>, transform_indices = @transform_3, window_bounds = array<i64: 4, 4>}, {pipeline_mode = #tpu.pipeline_mode<synchronous>, transform_indices = @transform_4, window_bounds = array<i64: 4, 1>}, {transform_indices = @transform_5, window_bounds = array<i64: 1, 4, 256>}]} {
    %c0 = arith.constant 0 : index
    %c0_0 = arith.constant 0 : index
    %c0_1 = arith.constant 0 : index
    %0 = vector.load %arg2[%c0, %c0_0, %c0_1] : memref<1x4x256xf32, #tpu.memory_space<vmem>>, vector<1x4x256xf32>
    %c0_2 = arith.constant 0 : index
    %c0_3 = arith.constant 0 : index
    %c0_4 = arith.constant 0 : index
    %1 = vector.load %arg3[%c0_2, %c0_3, %c0_4] : memref<1x4x256xf32, #tpu.memory_space<vmem>>, vector<1x4x256xf32>
    %c0_5 = arith.constant 0 : index
    %c0_6 = arith.constant 0 : index
    %2 = vector.load %arg4[%c0_5, %c0_6] : memref<4x4xf32, #tpu.memory_space<vmem>>, vector<4x4xf32>
    %3 = vector.shape_cast %2 : vector<4x4xf32> to vector<1x4x4xf32>
    %c0_7 = arith.constant 0 : index
    %c0_8 = arith.constant 0 : index
    %4 = vector.load %arg5[%c0_7, %c0_8] : memref<4x4xf32, #tpu.memory_space<vmem>>, vector<4x4xf32>
    %5 = vector.shape_cast %4 : vector<4x4xf32> to vector<1x4x4xf32>
    "tpu.trace_start"() <{level = 10 : i32, message = "boc,bcs->bos"}> : () -> ()
    %cst = arith.constant dense<0.000000e+00> : vector<1x4x256xf32>
    %6 = tpu.matmul %3, %0, %cst {dimension_numbers = #tpu.dot_dimension_numbers<[2], [1], [1], [2], [0, 0, 0, 1, 1, 2], [0], [0]>, precision = #tpu.contract_precision<fp32>} : vector<1x4x4xf32>, vector<1x4x256xf32>, vector<1x4x256xf32> -> vector<1x4x256xf32>
    %cst_9 = arith.constant dense<0.000000e+00> : vector<1x4x256xf32>
    %7 = tpu.matmul %5, %1, %cst_9 {dimension_numbers = #tpu.dot_dimension_numbers<[2], [1], [1], [2], [0, 0, 0, 1, 1, 2], [0], [0]>, precision = #tpu.contract_precision<fp32>} : vector<1x4x4xf32>, vector<1x4x256xf32>, vector<1x4x256xf32> -> vector<1x4x256xf32>
    "tpu.trace_stop"() : () -> ()
    %8 = arith.addf %6, %7 : vector<1x4x256xf32>
    %c0_10 = arith.constant 0 : index
    %c0_11 = arith.constant 0 : index
    %9 = vector.load %arg6[%c0_10, %c0_11] : memref<4x1xf32, #tpu.memory_space<vmem>>, vector<4x1xf32>
    %10 = vector.shape_cast %9 : vector<4x1xf32> to vector<1x4x1xf32>
    %11 = vector.broadcast %10 : vector<1x4x1xf32> to vector<1x4x256xf32>
    %12 = arith.addf %8, %11 : vector<1x4x256xf32>
    %cst_12 = arith.constant 1.000000e-01 : f32
    %13 = vector.broadcast %cst_12 : f32 to vector<1x4x256xf32>
    %14 = arith.mulf %13, %12 : vector<1x4x256xf32>
    %15 = arith.maximumf %12, %14 : vector<1x4x256xf32>
    %c0_13 = arith.constant 0 : index
    %c0_14 = arith.constant 0 : index
    %c0_15 = arith.constant 0 : index
    %16 = vector.load %arg7[%c0_13, %c0_14, %c0_15] : memref<1x4x256xf32, #tpu.memory_space<vmem>>, vector<1x4x256xf32>
    tpu.vector_store %arg7[%c0_13, %c0_14, %c0_15], %15 {strides = array<i32>} : memref<1x4x256xf32, #tpu.memory_space<vmem>>, vector<1x4x256xf32>,
    return
  }
  func.func @transform_0(%arg0: i32, %arg1: i32) -> (i32, i32, i32) {
    %c0_i32 = arith.constant 0 : i32
    %c0_i32_0 = arith.constant 0 : i32
    return %arg0, %c0_i32, %arg1 : i32, i32, i32
  }
  func.func @transform_1(%arg0: i32, %arg1: i32) -> (i32, i32, i32) {
    %c0_i32 = arith.constant 0 : i32
    %c0_i32_0 = arith.constant 0 : i32
    return %arg0, %c0_i32, %arg1 : i32, i32, i32
  }
  func.func @transform_2(%arg0: i32, %arg1: i32) -> (i32, i32) {
    %c0_i32 = arith.constant 0 : i32
    %c0_i32_0 = arith.constant 0 : i32
    %c0_i32_1 = arith.constant 0 : i32
    return %c0_i32, %c0_i32_0 : i32, i32
  }
  func.func @transform_3(%arg0: i32, %arg1: i32) -> (i32, i32) {
    %c0_i32 = arith.constant 0 : i32
    %c0_i32_0 = arith.constant 0 : i32
    %c0_i32_1 = arith.constant 0 : i32
    return %c0_i32, %c0_i32_0 : i32, i32
  }
  func.func @transform_4(%arg0: i32, %arg1: i32) -> (i32, i32) {
    %c0_i32 = arith.constant 0 : i32
    %c0_i32_0 = arith.constant 0 : i32
    %c0_i32_1 = arith.constant 0 : i32
    return %c0_i32, %c0_i32_0 : i32, i32
  }
  func.func @transform_5(%arg0: i32, %arg1: i32) -> (i32, i32, i32) {
    %c0_i32 = arith.constant 0 : i32
    %c0_i32_0 = arith.constant 0 : i32
    return %arg0, %c0_i32, %arg1 : i32, i32, i32
  }
}

</mosaic_0001>

<llo_original>
// kernel: tpu_custom_call.1
$region0: #{tpu_custom_call.1}
  #allocation0 [shape = 'u32[]', space=smem, size = 0x4, offset = 0x4, fixed_abs, tag = 'smem constant byte address 0x4 - core index']
  #allocation1 [shape = 'u32[72,128]{1,0:T(1,128)}', space=vmem, size = 0x9000, scoped, tag = 'internal scratch']
  %s0 = inlined_call_operand.hbm [shape: f32[2,4,256], index: 0, kind: input, shape index: {}]
  %s1 = inlined_call_operand.hbm [shape: f32[2,4,256], index: 1, kind: input, shape index: {}]
  %s2 = inlined_call_operand.vmem [shape: f32[4,4], index: 2, kind: input, shape index: {}]
  %s3 = inlined_call_operand.hbm [shape: f32[4,4], index: 3, kind: input, shape index: {}]
  %s4 = inlined_call_operand.vmem [shape: f32[4,1], index: 4, kind: input, shape index: {}]
  %s5 = inlined_call_operand.hbm [shape: f32[2,4,256], index: 5, kind: output, shape index: {}]
  %s6 = sld [smem:[#allocation0]]
  $region65: #{tpu_custom_call.1} parent=0
    _
  %s8 = ssub.s32 1, %s6
  %s9 = scalar_select 0, %s8, %s6
  $region1: #{tpu_custom_call.1} parent=0
    #allocation2 [shape = 'u8[8192]{0}', space=vmem, size = 0x2000, scoped, tag = 'input window, operand 0']
    #allocation3 [shape = 's32[2]{0}', space=sflag, size = 0x8, scoped, tag = 'scoped memory for tpu_custom_call.1']
    #allocation4 [shape = 's32[2]{0}', space=sflag, size = 0x8, scoped, tag = 'scoped memory for tpu_custom_call.1']
    #allocation5 [shape = 'u8[8192]{0}', space=vmem, size = 0x2000, scoped, tag = 'input window, operand 1']
    #allocation6 [shape = 's32[2]{0}', space=sflag, size = 0x8, scoped, tag = 'scoped memory for tpu_custom_call.1']
    #allocation7 [shape = 'u8[2048]{0}', space=vmem, size = 0x800, scoped, tag = 'input window, operand 3, single buffered']
    #allocation8 [shape = 'u8[8192]{0}', space=vmem, size = 0x2000, scoped, tag = 'output window, operand 0']
    %10 = vsyncpa [#allocation3], 0
    %s11 = scalar_lea.sflag [#allocation3], 1
    %12 = vsyncpa %s11, 0
    %13 = vsyncpa [#allocation6], 0
    %s14 = scalar_lea.sflag [#allocation6], 1
    %15 = vsyncpa %s14, 0
    %16 = vsyncpa [#allocation4], 0
    %s17 = scalar_lea.sflag [#allocation4], 1
    %18 = vsyncpa %s17, 0
    loop: start=0, step=1, limit=4
    $region2: #{tpu_custom_call.1} parent=1 // loop_pre_header
      _
    $region3: #{tpu_custom_call.1} parent=1 // loop_header
      %s20 = sphi 0, %s24
      %p21 = scmp.ge.s32.totalorder %s20, 4
      %s27 = sphi 0, %s39
      %s28 = sphi 0, %s35
      %s29 = sphi 0, %s27
      %s30 = sphi 0, %s28
      %s31 = sphi 0, %s29
      %s32 = sphi 0, %s30
      %s44 = sphi 0, %s46
      %s47 = sphi 0, %s44
      %s48 = sphi 0, %s47
      %s64 = sphi 0, %s48
      %s72 = sphi 0, %s74
      %s75 = sphi 0, %s72
      %s76 = sphi 0, %s75
      %s92 = sphi 0, %s76
      %s96 = sphi 0, %s96
      %s98 = sphi 0, %s96
      %s99 = sphi 0, %s98
      %s113 = sphi 0, %s99
      %s117 = sphi 0, %s117
      %s119 = sphi 0, %s117
      %s120 = sphi 0, %s119
      %s134 = sphi 0, %s120
      %s138 = sphi 0, %s138
      %s140 = sphi 0, %s138
      %s141 = sphi 0, %s140
      %s155 = sphi 0, %s141
      %s163 = sphi 0, %s165
      %s166 = sphi 0, %s163
      %s167 = sphi 0, %s166
      %s183 = sphi 0, %s167
    $region4: #{tpu_custom_call.1} parent=1 // loop_header_branch
      %23 = sbr.rel (%p21) target = $region8
    $region5: #{tpu_custom_call.1} parent=1 // loop_body
      %s25 = ssub.s32 %s20, 1
      %s26 = ssub.s32 %s20, 2
      %s33 = sadd.s32 1, %s28
      %p34 = scmp.ge.s32.totalorder %s33, 1
      %s35 = scalar_select %p34, 0, %s33
      %s36 = sadd.s32 1, %s27
      %s37 = scalar_select %p34, %s36, %s27
      %p38 = scmp.ge.s32.totalorder %s37, 2
      %s39 = scalar_select %p38, 0, %s37
      %s40 = ssub.s32 %s27, %s39
      %s41 = ssub.s32 %s28, %s35
      %s42 = sor.u32 %s40, %s41
      %p43 = scmp.eq.s32.totalorder %s42, 0
      %s45 = sadd.s32 %s44, 1
      %s46 = scalar_select %p43, %s44, %s45
      %p49 = pneg %p43
      %p50 = scmp.eq.s32.totalorder %s20, 1
      %p51 = por %p49, %p50
      %p52 = scmp.ne.s32.totalorder %s44, %s47
      %p53 = scmp.eq.s32.totalorder %s20, 0
      %p54 = por %p52, %p53
      %p55 = scmp.ne.s32.totalorder %s44, %s47
      %p56 = scmp.eq.s32.totalorder %s25, 1
      %p57 = por %p55, %p56
      %p58 = scmp.ne.s32.totalorder %s47, %s48
      %p59 = scmp.eq.s32.totalorder %s25, 0
      %p60 = por %p58, %p59
      %p61 = scmp.ne.s32.totalorder %s47, %s48
      %p62 = scmp.eq.s32.totalorder %s26, 1
      %p63 = por %p61, %p62
      %p65 = scmp.ne.s32.totalorder %s48, %s64
      %p66 = scmp.eq.s32.totalorder %s26, 0
      %p67 = por %p65, %p66
      %s68 = ssub.s32 %s27, %s39
      %s69 = ssub.s32 %s28, %s35
      %s70 = sor.u32 %s68, %s69
      %p71 = scmp.eq.s32.totalorder %s70, 0
      %s73 = sadd.s32 %s72, 1
      %s74 = scalar_select %p71, %s72, %s73
      %p77 = pneg %p71
      %p78 = scmp.eq.s32.totalorder %s20, 1
      %p79 = por %p77, %p78
      %p80 = scmp.ne.s32.totalorder %s72, %s75
      %p81 = scmp.eq.s32.totalorder %s20, 0
      %p82 = por %p80, %p81
      %p83 = scmp.ne.s32.totalorder %s72, %s75
      %p84 = scmp.eq.s32.totalorder %s25, 1
      %p85 = por %p83, %p84
      %p86 = scmp.ne.s32.totalorder %s75, %s76
      %p87 = scmp.eq.s32.totalorder %s25, 0
      %p88 = por %p86, %p87
      %p89 = scmp.ne.s32.totalorder %s75, %s76
      %p90 = scmp.eq.s32.totalorder %s26, 1
      %p91 = por %p89, %p90
      %p93 = scmp.ne.s32.totalorder %s76, %s92
      %p94 = scmp.eq.s32.totalorder %s26, 0
      %p95 = por %p93, %p94
      %s97 = sadd.s32 %s96, 1
      %p100 = scmp.eq.s32.totalorder %s20, 1
      %p101 = scmp.ne.s32.totalorder %s96, %s98
      %p102 = scmp.eq.s32.totalorder %s20, 0
      %p103 = por %p101, %p102
      %p104 = scmp.ne.s32.totalorder %s96, %s98
      %p105 = scmp.eq.s32.totalorder %s25, 1
      %p106 = por %p104, %p105
      %p107 = scmp.ne.s32.totalorder %s98, %s99
      %p108 = scmp.eq.s32.totalorder %s25, 0
      %p109 = por %p107, %p108
      %p110 = scmp.ne.s32.totalorder %s98, %s99
      %p111 = scmp.eq.s32.totalorder %s26, 1
      %p112 = por %p110, %p111
      %p114 = scmp.ne.s32.totalorder %s99, %s113
      %p115 = scmp.eq.s32.totalorder %s26, 0
      %p116 = por %p114, %p115
      %s118 = sadd.s32 %s117, 1
      %p121 = scmp.eq.s32.totalorder %s20, 1
      %p122 = scmp.ne.s32.totalorder %s117, %s119
      %p123 = scmp.eq.s32.totalorder %s20, 0
      %p124 = por %p122, %p123
      %p125 = scmp.ne.s32.totalorder %s117, %s119
      %p126 = scmp.eq.s32.totalorder %s25, 1
      %p127 = por %p125, %p126
      %p128 = scmp.ne.s32.totalorder %s119, %s120
      %p129 = scmp.eq.s32.totalorder %s25, 0
      %p130 = por %p128, %p129
      %p131 = scmp.ne.s32.totalorder %s119, %s120
      %p132 = scmp.eq.s32.totalorder %s26, 1
      %p133 = por %p131, %p132
      %p135 = scmp.ne.s32.totalorder %s120, %s134
      %p136 = scmp.eq.s32.totalorder %s26, 0
      %p137 = por %p135, %p136
      %s139 = sadd.s32 %s138, 1
      %p142 = scmp.eq.s32.totalorder %s20, 1
      %p143 = scmp.ne.s32.totalorder %s138, %s140
      %p144 = scmp.eq.s32.totalorder %s20, 0
      %p145 = por %p143, %p144
      %p146 = scmp.ne.s32.totalorder %s138, %s140
      %p147 = scmp.eq.s32.totalorder %s25, 1
      %p148 = por %p146, %p147
      %p149 = scmp.ne.s32.totalorder %s140, %s141
      %p150 = scmp.eq.s32.totalorder %s25, 0
      %p151 = por %p149, %p150
      %p152 = scmp.ne.s32.totalorder %s140, %s141
      %p153 = scmp.eq.s32.totalorder %s26, 1
      %p154 = por %p152, %p153
      %p156 = scmp.ne.s32.totalorder %s141, %s155
      %p157 = scmp.eq.s32.totalorder %s26, 0
      %p158 = por %p156, %p157
      %s159 = ssub.s32 %s27, %s39
      %s160 = ssub.s32 %s28, %s35
      %s161 = sor.u32 %s159, %s160
      %p162 = scmp.eq.s32.totalorder %s161, 0
      %s164 = sadd.s32 %s163, 1
      %s165 = scalar_select %p162, %s163, %s164
      %p168 = pneg %p162
      %p169 = scmp.eq.s32.totalorder %s20, 1
      %p170 = por %p168, %p169
      %p171 = scmp.ne.s32.totalorder %s163, %s166
      %p172 = scmp.eq.s32.totalorder %s20, 0
      %p173 = por %p171, %p172
      %p174 = scmp.ne.s32.totalorder %s163, %s166
      %p175 = scmp.eq.s32.totalorder %s25, 1
      %p176 = por %p174, %p175
      %p177 = scmp.ne.s32.totalorder %s166, %s167
      %p178 = scmp.eq.s32.totalorder %s25, 0
      %p179 = por %p177, %p178
      %p180 = scmp.ne.s32.totalorder %s166, %s167
      %p181 = scmp.eq.s32.totalorder %s26, 1
      %p182 = por %p180, %p181
      %p184 = scmp.ne.s32.totalorder %s167, %s183
      %p185 = scmp.eq.s32.totalorder %s26, 0
      %p186 = por %p184, %p185
      %p187 = scmp.le.s32.totalorder 1, %s20
      %p188 = scmp.lt.s32.totalorder %s20, 3
      %p189 = pnand %p187, %p188
      %p190 = pneg %p189
      // Predicated region
      $region9: #{tpu_custom_call.1} parent=5 // pred_check
        _
      $region10: #{tpu_custom_call.1} parent=5 // pred_check_branch
        %192 = sbr.rel (%p189) target = $region12
      $region11: #{tpu_custom_call.1} parent=5 // pred_region
        %s193 = ssub.s32 %s20, 1
        // Predicated region
        $region13: #{tpu_custom_call.1} parent=11 // pred_check
          %p194 = pneg %p109
        $region14: #{tpu_custom_call.1} parent=11 // pred_check_branch
          %196 = sbr.rel (%p194) target = $region16
        $region15: #{tpu_custom_call.1} parent=11 // pred_region
          _
        $region16: #{tpu_custom_call.1} parent=11 // pred_fallthru
          _
        // Predicated region
        $region17: #{tpu_custom_call.1} parent=11 // pred_check
          %p197 = pneg %p130
        $region18: #{tpu_custom_call.1} parent=11 // pred_check_branch
          %199 = sbr.rel (%p197) target = $region20
        $region19: #{tpu_custom_call.1} parent=11 // pred_region
          %201 = vsyncadd [#allocation6], 0
          %s203 = sshll.u32 %s3, 4
          %s204 = int_to_ptr.hbm [resolvable:$true] %s203
          %s205 = sshll.u32 [#allocation7], 4
          %s206 = int_to_ptr.vmem [resolvable:$true] %s205
          %208 = dma.hbm_to_vmem [thread:$0]  %s204, 64, %s206, [#allocation6]
        $region20: #{tpu_custom_call.1} parent=11 // pred_fallthru
          _
        // Predicated region
        $region21: #{tpu_custom_call.1} parent=11 // pred_check
          %p209 = pneg %p151
        $region22: #{tpu_custom_call.1} parent=11 // pred_check_branch
          %211 = sbr.rel (%p209) target = $region24
        $region23: #{tpu_custom_call.1} parent=11 // pred_region
          _
        $region24: #{tpu_custom_call.1} parent=11 // pred_fallthru
          _
      $region12: #{tpu_custom_call.1} parent=5 // pred_fallthru
        _
      %p212 = scmp.lt.s32.totalorder %s20, 2
      // Predicated region
      $region25: #{tpu_custom_call.1} parent=5 // pred_check
        %p213 = pneg %p212
      $region26: #{tpu_custom_call.1} parent=5 // pred_check_branch
        %215 = sbr.rel (%p213) target = $region28
      $region27: #{tpu_custom_call.1} parent=5 // pred_region
        // Predicated region
        $region29: #{tpu_custom_call.1} parent=27 // pred_check
          %p216 = pneg %p54
        $region30: #{tpu_custom_call.1} parent=27 // pred_check_branch
          %218 = sbr.rel (%p216) target = $region32
        $region31: #{tpu_custom_call.1} parent=27 // pred_region
          %s219 = sand.u32 %s44, 1
          %s220 = scalar_lea.sflag [#allocation3], %s219
          %s221 = sand.u32 %s44, 1
          %s222 = smul.addr %s221, 8
          %s223 = scalar_lea.vmem [#allocation2], %s222
          %s224 = smul.u32 2, %s28
          %226 = vsyncadd %s220, 0
          %s227 = smul.addr %s27, 2
          %s228 = sadd.s32 %s224, %s227
          %s229 = smul.addr %s228, 4
          %s230 = scalar_lea.hbm %s0, %s229
          %s232 = sshll.u32 %s230, 4
          %s233 = int_to_ptr.hbm [resolvable:$true] %s232
          %s234 = sshll.u32 %s223, 4
          %s235 = int_to_ptr.vmem [resolvable:$true] %s234
          %237 = dma.hbm_to_vmem [thread:$0]  %s233, 128, %s235, %s220
        $region32: #{tpu_custom_call.1} parent=27 // pred_fallthru
          _
        // Predicated region
        $region33: #{tpu_custom_call.1} parent=27 // pred_check
          %p238 = pneg %p82
        $region34: #{tpu_custom_call.1} parent=27 // pred_check_branch
          %240 = sbr.rel (%p238) target = $region36
        $region35: #{tpu_custom_call.1} parent=27 // pred_region
          %s241 = sand.u32 %s20, 1
          %s242 = scalar_lea.sflag [#allocation6], %s241
          %s243 = sand.u32 %s72, 1
          %s244 = smul.addr %s243, 8
          %s245 = scalar_lea.vmem [#allocation5], %s244
          %s246 = smul.u32 2, %s28
          %248 = vsyncadd %s242, 0
          %s249 = smul.addr %s27, 2
          %s250 = sadd.s32 %s246, %s249
          %s251 = smul.addr %s250, 4
          %s252 = scalar_lea.hbm %s1, %s251
          %s254 = sshll.u32 %s252, 4
          %s255 = int_to_ptr.hbm [resolvable:$true] %s254
          %s256 = sshll.u32 %s245, 4
          %s257 = int_to_ptr.vmem [resolvable:$true] %s256
          %259 = dma.hbm_to_vmem [thread:$0]  %s255, 128, %s257, %s242
        $region36: #{tpu_custom_call.1} parent=27 // pred_fallthru
          _
      $region28: #{tpu_custom_call.1} parent=5 // pred_fallthru
        _
      %p260 = scmp.le.s32.totalorder 1, %s20
      %p261 = scmp.lt.s32.totalorder %s20, 3
      %p262 = pnand %p260, %p261
      %p263 = pneg %p262
      // Predicated region
      $region37: #{tpu_custom_call.1} parent=5 // pred_check
        _
      $region38: #{tpu_custom_call.1} parent=5 // pred_check_branch
        %265 = sbr.rel (%p262) target = $region40
      $region39: #{tpu_custom_call.1} parent=5 // pred_region
        %s266 = ssub.s32 %s20, 1
        %s267 = sand.u32 %s47, 1
        %s268 = scalar_lea.sflag [#allocation3], %s267
        %s269 = sand.u32 %s47, 1
        %s270 = smul.addr %s269, 8
        %s271 = scalar_lea.vmem [#allocation2], %s270
        // Predicated region
        $region41: #{tpu_custom_call.1} parent=39 // pred_check
          %p272 = pneg %p60
        $region42: #{tpu_custom_call.1} parent=39 // pred_check_branch
          %274 = sbr.rel (%p272) target = $region44
        $region43: #{tpu_custom_call.1} parent=39 // pred_region
          %276 = dma.done %s268, 128
        $region44: #{tpu_custom_call.1} parent=39 // pred_fallthru
          _
        %s277 = sand.u32 %s25, 1
        %s278 = scalar_lea.sflag [#allocation6], %s277
        %s279 = sand.u32 %s75, 1
        %s280 = smul.addr %s279, 8
        %s281 = scalar_lea.vmem [#allocation5], %s280
        // Predicated region
        $region45: #{tpu_custom_call.1} parent=39 // pred_check
          %p282 = pneg %p88
        $region46: #{tpu_custom_call.1} parent=39 // pred_check_branch
          %284 = sbr.rel (%p282) target = $region48
        $region47: #{tpu_custom_call.1} parent=39 // pred_region
          %286 = dma.done %s278, 128
        $region48: #{tpu_custom_call.1} parent=39 // pred_fallthru
          _
        // Predicated region
        $region49: #{tpu_custom_call.1} parent=39 // pred_check
          %p287 = pneg %p130
        $region50: #{tpu_custom_call.1} parent=39 // pred_check_branch
          %289 = sbr.rel (%p287) target = $region52
        $region51: #{tpu_custom_call.1} parent=39 // pred_region
          %291 = dma.done [#allocation6], 64
        $region52: #{tpu_custom_call.1} parent=39 // pred_fallthru
          _
        %s292 = sand.u32 %s47, 1
        %s293 = scalar_lea.sflag [#allocation3], %s292
        %s294 = sand.u32 %s47, 1
        %s295 = smul.addr %s294, 8
        %s296 = scalar_lea.vmem [#allocation2], %s295
        %p297 = pneg %p60
        %p298 = pneg %p57
        %s299 = sand.u32 %s25, 1
        %s300 = scalar_lea.sflag [#allocation6], %s299
        %s301 = sand.u32 %s75, 1
        %s302 = smul.addr %s301, 8
        %s303 = scalar_lea.vmem [#allocation5], %s302
        %p304 = pneg %p88
        %p305 = pneg %p85
        %p306 = pneg %p109
        %p307 = pneg %p106
        %p308 = pneg %p130
        %p309 = pneg %p127
        %p310 = pneg %p151
        %p311 = pneg %p148
        %p312 = pneg %p179
        %p313 = pneg %p176
        %s314 = sand.u32 %s166, 1
        %s315 = scalar_lea.sflag [#allocation4], %s314
        %s316 = sand.u32 %s166, 1
        %s317 = smul.addr %s316, 8
        %s318 = scalar_lea.vmem [#allocation8], %s317
        %s319 = smul.u32 2, %s30
        %s320 = smul.u32 2, %s30
        %s321 = smul.u32 2, %s30
        %v322 = vld [vmem:[%s271] sm:$0xff]
        %v323 = vld [vmem:[%s281] sm:$0xff]
        %v324 = vld [vmem:[%s2] sm:$0xf]
        %v325 = vld [vmem:[#allocation7] sm:$0xf]
        %327 = vst [vmem:[#allocation1] ss:$2 sm:$0xff] %v323
        %v328 = vld.sshfl [vmem:[#allocation1] sm:$0xff pattern:$0x75316420]
        %v329 = vld.sshfl [vmem:[#allocation1 + $0x8] sm:$0xff pattern:$0x75316420]
        %vm330 = vcmask 31744
        %v332 = vsel %vm330, %v325, 0
        %vm334 = vcmask 1043456
        %v335 = vsel %vm334, %v328, 0
        %v337 = vsel %vm334, %v329, 0
        %339 = vmatpush.msra.mxu0 0.0
        %340 = vmatpush.msra.mxu0 0.0
        %341 = vmatpush.msra.mxu0 0.0
        %342 = vmatpush.msra.mxu0 0.0
        %343 = vmatpush.msra.mxu0 0.0
        %344 = vmatpush.msra.mxu0 0.0
        %345 = vmatpush.msra.mxu0 0.0
        %346 = vmatpush.msra.mxu0 0.0
        %347 = vmatpush.msra.mxu0 0.0
        %348 = vmatpush.msra.mxu0 0.0
        %349 = vmatpush.msra.mxu0 0.0
        %350 = vmatpush.msra.mxu0 0.0
        %351 = vmatpush.msra.mxu0 0.0
        %352 = vmatpush.msra.mxu0 0.0
        %353 = vmatpush.msra.mxu0 0.0
        %v354 = vand.u32 %v335, 4294901760
        %355 = vmatpush.msra.mxu0 %v354
        %v356 = vand.u32 %v332, 4294901760
        %v357 = vsub.f32 %v332, %v356
        %v358 = vand.u32 %v357, 4294901760
        %v359 = vsub.f32 %v357, %v358
        %v360 = vand.u32 %v359, 4294901760
        %361 = vmatmul.f32.gmra.mxu0 %v360
        %v362 = vpop.f32.mrf.mxu0
        %v363 = vadd.f32 0.0, %v362
        %364 = vdwg.mxu0
        %365 = vmatpush.msra.mxu0 0.0
        %366 = vmatpush.msra.mxu0 0.0
        %367 = vmatpush.msra.mxu0 0.0
        %368 = vmatpush.msra.mxu0 0.0
        %369 = vmatpush.msra.mxu0 0.0
        %370 = vmatpush.msra.mxu0 0.0
        %371 = vmatpush.msra.mxu0 0.0
        %372 = vmatpush.msra.mxu0 0.0
        %373 = vmatpush.msra.mxu0 0.0
        %374 = vmatpush.msra.mxu0 0.0
        %375 = vmatpush.msra.mxu0 0.0
        %376 = vmatpush.msra.mxu0 0.0
        %377 = vmatpush.msra.mxu0 0.0
        %378 = vmatpush.msra.mxu0 0.0
        %379 = vmatpush.msra.mxu0 0.0
        %v380 = vand.u32 %v335, 4294901760
        %v381 = vsub.f32 %v335, %v380
        %v382 = vand.u32 %v381, 4294901760
        %v383 = vsub.f32 %v381, %v382
        %v384 = vand.u32 %v383, 4294901760
        %385 = vmatpush.msra.mxu0 %v384
        %v386 = vand.u32 %v332, 4294901760
        %387 = vmatmul.f32.gmra.mxu0 %v386
        %v388 = vpop.f32.mrf.mxu0
        %v389 = vadd.f32 %v363, %v388
        %390 = vdwg.mxu0
        %391 = vmatpush.msra.mxu0 0.0
        %392 = vmatpush.msra.mxu0 0.0
        %393 = vmatpush.msra.mxu0 0.0
        %394 = vmatpush.msra.mxu0 0.0
        %395 = vmatpush.msra.mxu0 0.0
        %396 = vmatpush.msra.mxu0 0.0
        %397 = vmatpush.msra.mxu0 0.0
        %398 = vmatpush.msra.mxu0 0.0
        %399 = vmatpush.msra.mxu0 0.0
        %400 = vmatpush.msra.mxu0 0.0
        %401 = vmatpush.msra.mxu0 0.0
        %402 = vmatpush.msra.mxu0 0.0
        %403 = vmatpush.msra.mxu0 0.0
        %404 = vmatpush.msra.mxu0 0.0
        %405 = vmatpush.msra.mxu0 0.0
        %v406 = vand.u32 %v335, 4294901760
        %v407 = vsub.f32 %v335, %v406
        %408 = vmatpush.msra.mxu0 %v407
        %v409 = vand.u32 %v332, 4294901760
        %v410 = vsub.f32 %v332, %v409
        %411 = vmatmul.f32.gmra.mxu0 %v410
        %v412 = vpop.f32.mrf.mxu0
        %v413 = vadd.f32 %v389, %v412
        %414 = vdwg.mxu0
        %415 = vmatpush.msra.mxu0 0.0
        %416 = vmatpush.msra.mxu0 0.0
        %417 = vmatpush.msra.mxu0 0.0
        %418 = vmatpush.msra.mxu0 0.0
        %419 = vmatpush.msra.mxu0 0.0
        %420 = vmatpush.msra.mxu0 0.0
        %421 = vmatpush.msra.mxu0 0.0
        %422 = vmatpush.msra.mxu0 0.0
        %423 = vmatpush.msra.mxu0 0.0
        %424 = vmatpush.msra.mxu0 0.0
        %425 = vmatpush.msra.mxu0 0.0
        %426 = vmatpush.msra.mxu0 0.0
        %427 = vmatpush.msra.mxu0 0.0
        %428 = vmatpush.msra.mxu0 0.0
        %429 = vmatpush.msra.mxu0 0.0
        %v430 = vand.u32 %v335, 4294901760
        %431 = vmatpush.msra.mxu0 %v430
        %v432 = vand.u32 %v332, 4294901760
        %v433 = vsub.f32 %v332, %v432
        %v434 = vand.u32 %v433, 4294901760
        %435 = vmatmul.f32.gmra.mxu0 %v434
        %v436 = vpop.f32.mrf.mxu0
        %v437 = vadd.f32 %v413, %v436
        %438 = vdwg.mxu0
        %439 = vmatpush.msra.mxu0 0.0
        %440 = vmatpush.msra.mxu0 0.0
        %441 = vmatpush.msra.mxu0 0.0
        %442 = vmatpush.msra.mxu0 0.0
        %443 = vmatpush.msra.mxu0 0.0
        %444 = vmatpush.msra.mxu0 0.0
        %445 = vmatpush.msra.mxu0 0.0
        %446 = vmatpush.msra.mxu0 0.0
        %447 = vmatpush.msra.mxu0 0.0
        %448 = vmatpush.msra.mxu0 0.0
        %449 = vmatpush.msra.mxu0 0.0
        %450 = vmatpush.msra.mxu0 0.0
        %451 = vmatpush.msra.mxu0 0.0
        %452 = vmatpush.msra.mxu0 0.0
        %453 = vmatpush.msra.mxu0 0.0
        %v454 = vand.u32 %v335, 4294901760
        %v455 = vsub.f32 %v335, %v454
        %v456 = vand.u32 %v455, 4294901760
        %457 = vmatpush.msra.mxu0 %v456
        %v458 = vand.u32 %v332, 4294901760
        %459 = vmatmul.f32.gmra.mxu0 %v458
        %v460 = vpop.f32.mrf.mxu0
        %v461 = vadd.f32 %v437, %v460
        %462 = vdwg.mxu0
        %463 = vmatpush.msra.mxu0 0.0
        %464 = vmatpush.msra.mxu0 0.0
        %465 = vmatpush.msra.mxu0 0.0
        %466 = vmatpush.msra.mxu0 0.0
        %467 = vmatpush.msra.mxu0 0.0
        %468 = vmatpush.msra.mxu0 0.0
        %469 = vmatpush.msra.mxu0 0.0
        %470 = vmatpush.msra.mxu0 0.0
        %471 = vmatpush.msra.mxu0 0.0
        %472 = vmatpush.msra.mxu0 0.0
        %473 = vmatpush.msra.mxu0 0.0
        %474 = vmatpush.msra.mxu0 0.0
        %475 = vmatpush.msra.mxu0 0.0
        %476 = vmatpush.msra.mxu0 0.0
        %477 = vmatpush.msra.mxu0 0.0
        %v478 = vand.u32 %v335, 4294901760
        %479 = vmatpush.msra.mxu0 %v478
        %v480 = vand.u32 %v332, 4294901760
        %481 = vmatmul.f32.gmra.mxu0 %v480
        %v482 = vpop.f32.mrf.mxu0
        %v483 = vadd.f32 %v461, %v482
        %484 = vdwg.mxu0
        %485 = vmatpush.msra.mxu0 0.0
        %486 = vmatpush.msra.mxu0 0.0
        %487 = vmatpush.msra.mxu0 0.0
        %488 = vmatpush.msra.mxu0 0.0
        %489 = vmatpush.msra.mxu0 0.0
        %490 = vmatpush.msra.mxu0 0.0
        %491 = vmatpush.msra.mxu0 0.0
        %492 = vmatpush.msra.mxu0 0.0
        %493 = vmatpush.msra.mxu0 0.0
        %494 = vmatpush.msra.mxu0 0.0
        %495 = vmatpush.msra.mxu0 0.0
        %496 = vmatpush.msra.mxu0 0.0
        %497 = vmatpush.msra.mxu0 0.0
        %498 = vmatpush.msra.mxu0 0.0
        %499 = vmatpush.msra.mxu0 0.0
        %v500 = vand.u32 %v337, 4294901760
        %501 = vmatpush.msra.mxu0 %v500
        %v502 = vand.u32 %v332, 4294901760
        %v503 = vsub.f32 %v332, %v502
        %v504 = vand.u32 %v503, 4294901760
        %v505 = vsub.f32 %v503, %v504
        %v506 = vand.u32 %v505, 4294901760
        %507 = vmatmul.f32.gmra.mxu0 %v506
        %v508 = vpop.f32.mrf.mxu0
        %v509 = vadd.f32 0.0, %v508
        %510 = vdwg.mxu0
        %511 = vmatpush.msra.mxu0 0.0
        %512 = vmatpush.msra.mxu0 0.0
        %513 = vmatpush.msra.mxu0 0.0
        %514 = vmatpush.msra.mxu0 0.0
        %515 = vmatpush.msra.mxu0 0.0
        %516 = vmatpush.msra.mxu0 0.0
        %517 = vmatpush.msra.mxu0 0.0
        %518 = vmatpush.msra.mxu0 0.0
        %519 = vmatpush.msra.mxu0 0.0
        %520 = vmatpush.msra.mxu0 0.0
        %521 = vmatpush.msra.mxu0 0.0
        %522 = vmatpush.msra.mxu0 0.0
        %523 = vmatpush.msra.mxu0 0.0
        %524 = vmatpush.msra.mxu0 0.0
        %525 = vmatpush.msra.mxu0 0.0
        %v526 = vand.u32 %v337, 4294901760
        %v527 = vsub.f32 %v337, %v526
        %v528 = vand.u32 %v527, 4294901760
        %v529 = vsub.f32 %v527, %v528
        %v530 = vand.u32 %v529, 4294901760
        %531 = vmatpush.msra.mxu0 %v530
        %v532 = vand.u32 %v332, 4294901760
        %533 = vmatmul.f32.gmra.mxu0 %v532
        %v534 = vpop.f32.mrf.mxu0
        %v535 = vadd.f32 %v509, %v534
        %536 = vdwg.mxu0
        %537 = vmatpush.msra.mxu0 0.0
        %538 = vmatpush.msra.mxu0 0.0
        %539 = vmatpush.msra.mxu0 0.0
        %540 = vmatpush.msra.mxu0 0.0
        %541 = vmatpush.msra.mxu0 0.0
        %542 = vmatpush.msra.mxu0 0.0
        %543 = vmatpush.msra.mxu0 0.0
        %544 = vmatpush.msra.mxu0 0.0
        %545 = vmatpush.msra.mxu0 0.0
        %546 = vmatpush.msra.mxu0 0.0
        %547 = vmatpush.msra.mxu0 0.0
        %548 = vmatpush.msra.mxu0 0.0
        %549 = vmatpush.msra.mxu0 0.0
        %550 = vmatpush.msra.mxu0 0.0
        %551 = vmatpush.msra.mxu0 0.0
        %v552 = vand.u32 %v337, 4294901760
        %v553 = vsub.f32 %v337, %v552
        %554 = vmatpush.msra.mxu0 %v553
        %v555 = vand.u32 %v332, 4294901760
        %v556 = vsub.f32 %v332, %v555
        %557 = vmatmul.f32.gmra.mxu0 %v556
        %v558 = vpop.f32.mrf.mxu0
        %v559 = vadd.f32 %v535, %v558
        %560 = vdwg.mxu0
        %561 = vmatpush.msra.mxu0 0.0
        %562 = vmatpush.msra.mxu0 0.0
        %563 = vmatpush.msra.mxu0 0.0
        %564 = vmatpush.msra.mxu0 0.0
        %565 = vmatpush.msra.mxu0 0.0
        %566 = vmatpush.msra.mxu0 0.0
        %567 = vmatpush.msra.mxu0 0.0
        %568 = vmatpush.msra.mxu0 0.0
        %569 = vmatpush.msra.mxu0 0.0
        %570 = vmatpush.msra.mxu0 0.0
        %571 = vmatpush.msra.mxu0 0.0
        %572 = vmatpush.msra.mxu0 0.0
        %573 = vmatpush.msra.mxu0 0.0
        %574 = vmatpush.msra.mxu0 0.0
        %575 = vmatpush.msra.mxu0 0.0
        %v576 = vand.u32 %v337, 4294901760
        %577 = vmatpush.msra.mxu0 %v576
        %v578 = vand.u32 %v332, 4294901760
        %v579 = vsub.f32 %v332, %v578
        %v580 = vand.u32 %v579, 4294901760
        %581 = vmatmul.f32.gmra.mxu0 %v580
        %v582 = vpop.f32.mrf.mxu0
        %v583 = vadd.f32 %v559, %v582
        %584 = vdwg.mxu0
        %585 = vmatpush.msra.mxu0 0.0
        %586 = vmatpush.msra.mxu0 0.0
        %587 = vmatpush.msra.mxu0 0.0
        %588 = vmatpush.msra.mxu0 0.0
        %589 = vmatpush.msra.mxu0 0.0
        %590 = vmatpush.msra.mxu0 0.0
        %591 = vmatpush.msra.mxu0 0.0
        %592 = vmatpush.msra.mxu0 0.0
        %593 = vmatpush.msra.mxu0 0.0
        %594 = vmatpush.msra.mxu0 0.0
        %595 = vmatpush.msra.mxu0 0.0
        %596 = vmatpush.msra.mxu0 0.0
        %597 = vmatpush.msra.mxu0 0.0
        %598 = vmatpush.msra.mxu0 0.0
        %599 = vmatpush.msra.mxu0 0.0
        %v600 = vand.u32 %v337, 4294901760
        %v601 = vsub.f32 %v337, %v600
        %v602 = vand.u32 %v601, 4294901760
        %603 = vmatpush.msra.mxu0 %v602
        %v604 = vand.u32 %v332, 4294901760
        %605 = vmatmul.f32.gmra.mxu0 %v604
        %v606 = vpop.f32.mrf.mxu0
        %v607 = vadd.f32 %v583, %v606
        %608 = vdwg.mxu0
        %609 = vmatpush.msra.mxu0 0.0
        %610 = vmatpush.msra.mxu0 0.0
        %611 = vmatpush.msra.mxu0 0.0
        %612 = vmatpush.msra.mxu0 0.0
        %613 = vmatpush.msra.mxu0 0.0
        %614 = vmatpush.msra.mxu0 0.0
        %615 = vmatpush.msra.mxu0 0.0
        %616 = vmatpush.msra.mxu0 0.0
        %617 = vmatpush.msra.mxu0 0.0
        %618 = vmatpush.msra.mxu0 0.0
        %619 = vmatpush.msra.mxu0 0.0
        %620 = vmatpush.msra.mxu0 0.0
        %621 = vmatpush.msra.mxu0 0.0
        %622 = vmatpush.msra.mxu0 0.0
        %623 = vmatpush.msra.mxu0 0.0
        %v624 = vand.u32 %v337, 4294901760
        %625 = vmatpush.msra.mxu0 %v624
        %v626 = vand.u32 %v332, 4294901760
        %627 = vmatmul.f32.gmra.mxu0 %v626
        %v628 = vpop.f32.mrf.mxu0
        %v629 = vadd.f32 %v607, %v628
        %630 = vdwg.mxu0
        %632 = vst [vmem:[#allocation1] ss:$2 sm:$0xff] %v322
        %v633 = vld.sshfl [vmem:[#allocation1] sm:$0xff pattern:$0x75316420]
        %v634 = vld.sshfl [vmem:[#allocation1 + $0x8] sm:$0xff pattern:$0x75316420]
        %v636 = vsel %vm330, %v324, 0
        %v638 = vsel %vm334, %v633, 0
        %v640 = vsel %vm334, %v634, 0
        %642 = vmatpush.msra.mxu0 0.0
        %643 = vmatpush.msra.mxu0 0.0
        %644 = vmatpush.msra.mxu0 0.0
        %645 = vmatpush.msra.mxu0 0.0
        %646 = vmatpush.msra.mxu0 0.0
        %647 = vmatpush.msra.mxu0 0.0
        %648 = vmatpush.msra.mxu0 0.0
        %649 = vmatpush.msra.mxu0 0.0
        %650 = vmatpush.msra.mxu0 0.0
        %651 = vmatpush.msra.mxu0 0.0
        %652 = vmatpush.msra.mxu0 0.0
        %653 = vmatpush.msra.mxu0 0.0
        %654 = vmatpush.msra.mxu0 0.0
        %655 = vmatpush.msra.mxu0 0.0
        %656 = vmatpush.msra.mxu0 0.0
        %v657 = vand.u32 %v638, 4294901760
        %658 = vmatpush.msra.mxu0 %v657
        %v659 = vand.u32 %v636, 4294901760
        %v660 = vsub.f32 %v636, %v659
        %v661 = vand.u32 %v660, 4294901760
        %v662 = vsub.f32 %v660, %v661
        %v663 = vand.u32 %v662, 4294901760
        %664 = vmatmul.f32.gmra.mxu0 %v663
        %v665 = vpop.f32.mrf.mxu0
        %v666 = vadd.f32 %v483, %v665
        %667 = vdwg.mxu0
        %668 = vmatpush.msra.mxu0 0.0
        %669 = vmatpush.msra.mxu0 0.0
        %670 = vmatpush.msra.mxu0 0.0
        %671 = vmatpush.msra.mxu0 0.0
        %672 = vmatpush.msra.mxu0 0.0
        %673 = vmatpush.msra.mxu0 0.0
        %674 = vmatpush.msra.mxu0 0.0
        %675 = vmatpush.msra.mxu0 0.0
        %676 = vmatpush.msra.mxu0 0.0
        %677 = vmatpush.msra.mxu0 0.0
        %678 = vmatpush.msra.mxu0 0.0
        %679 = vmatpush.msra.mxu0 0.0
        %680 = vmatpush.msra.mxu0 0.0
        %681 = vmatpush.msra.mxu0 0.0
        %682 = vmatpush.msra.mxu0 0.0
        %v683 = vand.u32 %v638, 4294901760
        %v684 = vsub.f32 %v638, %v683
        %v685 = vand.u32 %v684, 4294901760
        %v686 = vsub.f32 %v684, %v685
        %v687 = vand.u32 %v686, 4294901760
        %688 = vmatpush.msra.mxu0 %v687
        %v689 = vand.u32 %v636, 4294901760
        %690 = vmatmul.f32.gmra.mxu0 %v689
        %v691 = vpop.f32.mrf.mxu0
        %v692 = vadd.f32 %v666, %v691
        %693 = vdwg.mxu0
        %694 = vmatpush.msra.mxu0 0.0
        %695 = vmatpush.msra.mxu0 0.0
        %696 = vmatpush.msra.mxu0 0.0
        %697 = vmatpush.msra.mxu0 0.0
        %698 = vmatpush.msra.mxu0 0.0
        %699 = vmatpush.msra.mxu0 0.0
        %700 = vmatpush.msra.mxu0 0.0
        %701 = vmatpush.msra.mxu0 0.0
        %702 = vmatpush.msra.mxu0 0.0
        %703 = vmatpush.msra.mxu0 0.0
        %704 = vmatpush.msra.mxu0 0.0
        %705 = vmatpush.msra.mxu0 0.0
        %706 = vmatpush.msra.mxu0 0.0
        %707 = vmatpush.msra.mxu0 0.0
        %708 = vmatpush.msra.mxu0 0.0
        %v709 = vand.u32 %v638, 4294901760
        %v710 = vsub.f32 %v638, %v709
        %711 = vmatpush.msra.mxu0 %v710
        %v712 = vand.u32 %v636, 4294901760
        %v713 = vsub.f32 %v636, %v712
        %714 = vmatmul.f32.gmra.mxu0 %v713
        %v715 = vpop.f32.mrf.mxu0
        %v716 = vadd.f32 %v692, %v715
        %717 = vdwg.mxu0
        %718 = vmatpush.msra.mxu0 0.0
        %719 = vmatpush.msra.mxu0 0.0
        %720 = vmatpush.msra.mxu0 0.0
        %721 = vmatpush.msra.mxu0 0.0
        %722 = vmatpush.msra.mxu0 0.0
        %723 = vmatpush.msra.mxu0 0.0
        %724 = vmatpush.msra.mxu0 0.0
        %725 = vmatpush.msra.mxu0 0.0
        %726 = vmatpush.msra.mxu0 0.0
        %727 = vmatpush.msra.mxu0 0.0
        %728 = vmatpush.msra.mxu0 0.0
        %729 = vmatpush.msra.mxu0 0.0
        %730 = vmatpush.msra.mxu0 0.0
        %731 = vmatpush.msra.mxu0 0.0
        %732 = vmatpush.msra.mxu0 0.0
        %v733 = vand.u32 %v638, 4294901760
        %734 = vmatpush.msra.mxu0 %v733
        %v735 = vand.u32 %v636, 4294901760
        %v736 = vsub.f32 %v636, %v735
        %v737 = vand.u32 %v736, 4294901760
        %738 = vmatmul.f32.gmra.mxu0 %v737
        %v739 = vpop.f32.mrf.mxu0
        %v740 = vadd.f32 %v716, %v739
        %741 = vdwg.mxu0
        %742 = vmatpush.msra.mxu0 0.0
        %743 = vmatpush.msra.mxu0 0.0
        %744 = vmatpush.msra.mxu0 0.0
        %745 = vmatpush.msra.mxu0 0.0
        %746 = vmatpush.msra.mxu0 0.0
        %747 = vmatpush.msra.mxu0 0.0
        %748 = vmatpush.msra.mxu0 0.0
        %749 = vmatpush.msra.mxu0 0.0
        %750 = vmatpush.msra.mxu0 0.0
        %751 = vmatpush.msra.mxu0 0.0
        %752 = vmatpush.msra.mxu0 0.0
        %753 = vmatpush.msra.mxu0 0.0
        %754 = vmatpush.msra.mxu0 0.0
        %755 = vmatpush.msra.mxu0 0.0
        %756 = vmatpush.msra.mxu0 0.0
        %v757 = vand.u32 %v638, 4294901760
        %v758 = vsub.f32 %v638, %v757
        %v759 = vand.u32 %v758, 4294901760
        %760 = vmatpush.msra.mxu0 %v759
        %v761 = vand.u32 %v636, 4294901760
        %762 = vmatmul.f32.gmra.mxu0 %v761
        %v763 = vpop.f32.mrf.mxu0
        %v764 = vadd.f32 %v740, %v763
        %765 = vdwg.mxu0
        %766 = vmatpush.msra.mxu0 0.0
        %767 = vmatpush.msra.mxu0 0.0
        %768 = vmatpush.msra.mxu0 0.0
        %769 = vmatpush.msra.mxu0 0.0
        %770 = vmatpush.msra.mxu0 0.0
        %771 = vmatpush.msra.mxu0 0.0
        %772 = vmatpush.msra.mxu0 0.0
        %773 = vmatpush.msra.mxu0 0.0
        %774 = vmatpush.msra.mxu0 0.0
        %775 = vmatpush.msra.mxu0 0.0
        %776 = vmatpush.msra.mxu0 0.0
        %777 = vmatpush.msra.mxu0 0.0
        %778 = vmatpush.msra.mxu0 0.0
        %779 = vmatpush.msra.mxu0 0.0
        %780 = vmatpush.msra.mxu0 0.0
        %v781 = vand.u32 %v638, 4294901760
        %782 = vmatpush.msra.mxu0 %v781
        %v783 = vand.u32 %v636, 4294901760
        %784 = vmatmul.f32.gmra.mxu0 %v783
        %v785 = vpop.f32.mrf.mxu0
        %v786 = vadd.f32 %v764, %v785
        %787 = vdwg.mxu0
        %788 = vmatpush.msra.mxu0 0.0
        %789 = vmatpush.msra.mxu0 0.0
        %790 = vmatpush.msra.mxu0 0.0
        %791 = vmatpush.msra.mxu0 0.0
        %792 = vmatpush.msra.mxu0 0.0
        %793 = vmatpush.msra.mxu0 0.0
        %794 = vmatpush.msra.mxu0 0.0
        %795 = vmatpush.msra.mxu0 0.0
        %796 = vmatpush.msra.mxu0 0.0
        %797 = vmatpush.msra.mxu0 0.0
        %798 = vmatpush.msra.mxu0 0.0
        %799 = vmatpush.msra.mxu0 0.0
        %800 = vmatpush.msra.mxu0 0.0
        %801 = vmatpush.msra.mxu0 0.0
        %802 = vmatpush.msra.mxu0 0.0
        %v803 = vand.u32 %v640, 4294901760
        %804 = vmatpush.msra.mxu0 %v803
        %v805 = vand.u32 %v636, 4294901760
        %v806 = vsub.f32 %v636, %v805
        %v807 = vand.u32 %v806, 4294901760
        %v808 = vsub.f32 %v806, %v807
        %v809 = vand.u32 %v808, 4294901760
        %810 = vmatmul.f32.gmra.mxu0 %v809
        %v811 = vpop.f32.mrf.mxu0
        %v812 = vadd.f32 %v629, %v811
        %813 = vdwg.mxu0
        %814 = vmatpush.msra.mxu0 0.0
        %815 = vmatpush.msra.mxu0 0.0
        %816 = vmatpush.msra.mxu0 0.0
        %817 = vmatpush.msra.mxu0 0.0
        %818 = vmatpush.msra.mxu0 0.0
        %819 = vmatpush.msra.mxu0 0.0
        %820 = vmatpush.msra.mxu0 0.0
        %821 = vmatpush.msra.mxu0 0.0
        %822 = vmatpush.msra.mxu0 0.0
        %823 = vmatpush.msra.mxu0 0.0
        %824 = vmatpush.msra.mxu0 0.0
        %825 = vmatpush.msra.mxu0 0.0
        %826 = vmatpush.msra.mxu0 0.0
        %827 = vmatpush.msra.mxu0 0.0
        %828 = vmatpush.msra.mxu0 0.0
        %v829 = vand.u32 %v640, 4294901760
        %v830 = vsub.f32 %v640, %v829
        %v831 = vand.u32 %v830, 4294901760
        %v832 = vsub.f32 %v830, %v831
        %v833 = vand.u32 %v832, 4294901760
        %834 = vmatpush.msra.mxu0 %v833
        %v835 = vand.u32 %v636, 4294901760
        %836 = vmatmul.f32.gmra.mxu0 %v835
        %v837 = vpop.f32.mrf.mxu0
        %v838 = vadd.f32 %v812, %v837
        %839 = vdwg.mxu0
        %840 = vmatpush.msra.mxu0 0.0
        %841 = vmatpush.msra.mxu0 0.0
        %842 = vmatpush.msra.mxu0 0.0
        %843 = vmatpush.msra.mxu0 0.0
        %844 = vmatpush.msra.mxu0 0.0
        %845 = vmatpush.msra.mxu0 0.0
        %846 = vmatpush.msra.mxu0 0.0
        %847 = vmatpush.msra.mxu0 0.0
        %848 = vmatpush.msra.mxu0 0.0
        %849 = vmatpush.msra.mxu0 0.0
        %850 = vmatpush.msra.mxu0 0.0
        %851 = vmatpush.msra.mxu0 0.0
        %852 = vmatpush.msra.mxu0 0.0
        %853 = vmatpush.msra.mxu0 0.0
        %854 = vmatpush.msra.mxu0 0.0
        %v855 = vand.u32 %v640, 4294901760
        %v856 = vsub.f32 %v640, %v855
        %857 = vmatpush.msra.mxu0 %v856
        %v858 = vand.u32 %v636, 4294901760
        %v859 = vsub.f32 %v636, %v858
        %860 = vmatmul.f32.gmra.mxu0 %v859
        %v861 = vpop.f32.mrf.mxu0
        %v862 = vadd.f32 %v838, %v861
        %863 = vdwg.mxu0
        %864 = vmatpush.msra.mxu0 0.0
        %865 = vmatpush.msra.mxu0 0.0
        %866 = vmatpush.msra.mxu0 0.0
        %867 = vmatpush.msra.mxu0 0.0
        %868 = vmatpush.msra.mxu0 0.0
        %869 = vmatpush.msra.mxu0 0.0
        %870 = vmatpush.msra.mxu0 0.0
        %871 = vmatpush.msra.mxu0 0.0
        %872 = vmatpush.msra.mxu0 0.0
        %873 = vmatpush.msra.mxu0 0.0
        %874 = vmatpush.msra.mxu0 0.0
        %875 = vmatpush.msra.mxu0 0.0
        %876 = vmatpush.msra.mxu0 0.0
        %877 = vmatpush.msra.mxu0 0.0
        %878 = vmatpush.msra.mxu0 0.0
        %v879 = vand.u32 %v640, 4294901760
        %880 = vmatpush.msra.mxu0 %v879
        %v881 = vand.u32 %v636, 4294901760
        %v882 = vsub.f32 %v636, %v881
        %v883 = vand.u32 %v882, 4294901760
        %884 = vmatmul.f32.gmra.mxu0 %v883
        %v885 = vpop.f32.mrf.mxu0
        %v886 = vadd.f32 %v862, %v885
        %887 = vdwg.mxu0
        %888 = vmatpush.msra.mxu0 0.0
        %889 = vmatpush.msra.mxu0 0.0
        %890 = vmatpush.msra.mxu0 0.0
        %891 = vmatpush.msra.mxu0 0.0
        %892 = vmatpush.msra.mxu0 0.0
        %893 = vmatpush.msra.mxu0 0.0
        %894 = vmatpush.msra.mxu0 0.0
        %895 = vmatpush.msra.mxu0 0.0
        %896 = vmatpush.msra.mxu0 0.0
        %897 = vmatpush.msra.mxu0 0.0
        %898 = vmatpush.msra.mxu0 0.0
        %899 = vmatpush.msra.mxu0 0.0
        %900 = vmatpush.msra.mxu0 0.0
        %901 = vmatpush.msra.mxu0 0.0
        %902 = vmatpush.msra.mxu0 0.0
        %v903 = vand.u32 %v640, 4294901760
        %v904 = vsub.f32 %v640, %v903
        %v905 = vand.u32 %v904, 4294901760
        %906 = vmatpush.msra.mxu0 %v905
        %v907 = vand.u32 %v636, 4294901760
        %908 = vmatmul.f32.gmra.mxu0 %v907
        %v909 = vpop.f32.mrf.mxu0
        %v910 = vadd.f32 %v886, %v909
        %911 = vdwg.mxu0
        %912 = vmatpush.msra.mxu0 0.0
        %913 = vmatpush.msra.mxu0 0.0
        %914 = vmatpush.msra.mxu0 0.0
        %915 = vmatpush.msra.mxu0 0.0
        %916 = vmatpush.msra.mxu0 0.0
        %917 = vmatpush.msra.mxu0 0.0
        %918 = vmatpush.msra.mxu0 0.0
        %919 = vmatpush.msra.mxu0 0.0
        %920 = vmatpush.msra.mxu0 0.0
        %921 = vmatpush.msra.mxu0 0.0
        %922 = vmatpush.msra.mxu0 0.0
        %923 = vmatpush.msra.mxu0 0.0
        %924 = vmatpush.msra.mxu0 0.0
        %925 = vmatpush.msra.mxu0 0.0
        %926 = vmatpush.msra.mxu0 0.0
        %v927 = vand.u32 %v640, 4294901760
        %928 = vmatpush.msra.mxu0 %v927
        %v929 = vand.u32 %v636, 4294901760
        %930 = vmatmul.f32.gmra.mxu0 %v929
        %v931 = vpop.f32.mrf.mxu0
        %v932 = vadd.f32 %v910, %v931
        %933 = vdwg.mxu0
        %v934 = vld [vmem:[%s4] sm:$0xf]
        %936 = vset.pattern.permute.xlu0 0
        %937 = vperm.xlu0 %936, %v934
        %v938 = vpop.permute.xlu0 %937
        %v940 = vadd.f32 %v786, %v938
        %v941 = vadd.f32 %v932, %v938
        %v942 = vmul.f32 %v940, 0.1
        %v943 = vmul.f32 %v941, 0.1
        %v944 = vmax.f32 %v940, %v942
        %v945 = vmax.f32 %v941, %v943
        %v948 = vrot.slane %v945, 4
        %v949 = vsel %vm334, %v944, %v948
        %951 = vst [vmem:[%s318] sm:$0xff] %v949
        %s952 = sand.u32 %s166, 1
        %s953 = scalar_lea.sflag [#allocation4], %s952
        %s954 = sand.u32 %s166, 1
        %s955 = smul.addr %s954, 8
        %s956 = scalar_lea.vmem [#allocation8], %s955
        // Predicated region
        $region53: #{tpu_custom_call.1} parent=39 // pred_check
          %p957 = pneg %p176
        $region54: #{tpu_custom_call.1} parent=39 // pred_check_branch
          %959 = sbr.rel (%p957) target = $region56
        $region55: #{tpu_custom_call.1} parent=39 // pred_region
          %s960 = smul.u32 2, %s30
          %962 = vsyncadd %s953, 0
          %s963 = smul.addr %s29, 2
          %s964 = sadd.s32 %s960, %s963
          %s965 = smul.addr %s964, 4
          %s966 = scalar_lea.hbm %s5, %s965
          %s968 = sshll.u32 %s956, 4
          %s969 = int_to_ptr.vmem [resolvable:$true] %s968
          %s970 = sshll.u32 %s966, 4
          %s971 = int_to_ptr.hbm [resolvable:$true] %s970
          %973 = dma.vmem_to_hbm [thread:$0]  %s969, 128, %s971, %s953
        $region56: #{tpu_custom_call.1} parent=39 // pred_fallthru
          _
      $region40: #{tpu_custom_call.1} parent=5 // pred_fallthru
        _
      %p974 = scmp.le.s32.totalorder 2, %s20
      // Predicated region
      $region57: #{tpu_custom_call.1} parent=5 // pred_check
        %p975 = pneg %p974
      $region58: #{tpu_custom_call.1} parent=5 // pred_check_branch
        %977 = sbr.rel (%p975) target = $region60
      $region59: #{tpu_custom_call.1} parent=5 // pred_region
        %s978 = ssub.s32 %s20, 2
        // Predicated region
        $region61: #{tpu_custom_call.1} parent=59 // pred_check
          %p979 = pneg %p182
        $region62: #{tpu_custom_call.1} parent=59 // pred_check_branch
          %981 = sbr.rel (%p979) target = $region64
        $region63: #{tpu_custom_call.1} parent=59 // pred_region
          %s982 = sand.u32 %s167, 1
          %s983 = scalar_lea.sflag [#allocation4], %s982
          %s984 = sand.u32 %s167, 1
          %s985 = smul.addr %s984, 8
          %s986 = scalar_lea.vmem [#allocation8], %s985
          %988 = dma.done %s983, 128
        $region64: #{tpu_custom_call.1} parent=59 // pred_fallthru
          _
      $region60: #{tpu_custom_call.1} parent=5 // pred_fallthru
        _
    $region6: #{tpu_custom_call.1} parent=1 // loop_footer
      %s24 = sadd.s32 1, %s20
    $region7: #{tpu_custom_call.1} parent=1 // loop_footer_branch
      %19 = sbr.rel target = $region3
    $region8: #{tpu_custom_call.1} parent=1 // loop_exit
      _
    %989 = vsyncpa [#allocation3], 1
    %s990 = scalar_lea.sflag [#allocation3], 1
    %991 = vsyncpa %s990, 1
    %992 = vsyncpa [#allocation6], 1
    %s993 = scalar_lea.sflag [#allocation6], 1
    %994 = vsyncpa %s993, 1
    %995 = vsyncpa [#allocation4], 1
    %s996 = scalar_lea.sflag [#allocation4], 1
    %997 = vsyncpa %s996, 1

</llo_original>
